<compile_context>
chip_gen: v7x
topology: tpu7x:2x2x1
jax: 0.10.0
libtpu: 0.0.40
codegen_flags: <defaults>
</compile_context>

<pallas_src>
import jax
import jax.numpy as jnp
from jax.experimental import pallas as pl
from jax.experimental.pallas import tpu as pltpu

IN_F = 784          # MNIST flattened features
IN_F_PAD = 896      # 7 * 128 (lane-aligned K)
H = 128             # hidden width
OUT_F = 10          # classes
OUT_F_PAD = 128     # lane-dense output width
TILE_B_MAX = 512    # batch tile (multiple of MXU M, VMEM-safe on v7x's 64 MiB)
NEG_PAD_BIAS = -1e30  # finite "minus infinity" for padded logits


def _round_up(n, m):
    return ((n + m - 1) // m) * m


def mlp_logsoftmax_kernel(x_ref, w1_ref, b1_ref, w2_ref, b2_ref, w3_ref, b3_ref,
                          o_ref):
    """One batch tile: 3 matmuls (bf16 MXU, f32 acc) + ReLUs + log_softmax."""
    x = x_ref[...].astype(jnp.bfloat16)                         # (TB, 896)

    # Linear(784->128) + ReLU   (padded K columns of x / rows of W1 are zero)
    h1 = jnp.dot(x, w1_ref[...], preferred_element_type=jnp.float32) + b1_ref[...]
    h1 = jnp.maximum(h1, 0.0)

    # Linear(128->128) + ReLU
    h2 = jnp.dot(h1.astype(jnp.bfloat16), w2_ref[...],
                 preferred_element_type=jnp.float32) + b2_ref[...]
    h2 = jnp.maximum(h2, 0.0)

    # Linear(128->10), padded to 128 output lanes (extra cols: 0-weight, -1e30 bias)
    logits = jnp.dot(h2.astype(jnp.bfloat16), w3_ref[...],
                     preferred_element_type=jnp.float32) + b3_ref[...]

    # Numerically stable log_softmax over the (padded) last axis; padded columns
    # contribute exp(-1e30 - m) == 0 to the sum, so real log-probs are exact.
    m = jnp.max(logits, axis=-1, keepdims=True)
    shifted = logits - m
    lse = jnp.log(jnp.sum(jnp.exp(shifted), axis=-1, keepdims=True))
    o_ref[...] = shifted - lse


def linear_mnist_forward(x, params):
    """x: (B, 784) float32 -> (B, 10) float32 log-probabilities."""
    w1, b1, w2, b2, w3, b3 = params
    B = x.shape[0]

    tile_b = min(TILE_B_MAX, _round_up(B, 8))      # >= 8 sublanes, <= 512
    b_pad = _round_up(B, tile_b)
    grid = (b_pad // tile_b,)

    # Zero-pad batch to a tile multiple and features to the lane-aligned 896.
    x_p = jnp.pad(x, ((0, b_pad - B), (0, IN_F_PAD - IN_F)))

    # Advisory cost estimate for XLA scheduling around the custom call.
    weight_elems = IN_F_PAD * H + H * H + H * OUT_F_PAD
    cost = pl.CostEstimate(
        flops=2 * b_pad * weight_elems,
        transcendentals=b_pad * (OUT_F_PAD + 1),           # exp per logit + log per row
        bytes_accessed=(b_pad * IN_F_PAD * 4               # x (f32)
                        + weight_elems * 2                 # weights (bf16)
                        + (H + H + OUT_F_PAD) * 4          # biases (f32)
                        + b_pad * OUT_F_PAD * 4),          # output (f32)
    )

    resident = lambda i: (0, 0)   # weights/biases: same block every step -> stay in VMEM
    out_padded = pl.pallas_call(
        mlp_logsoftmax_kernel,
        out_shape=jax.ShapeDtypeStruct((b_pad, OUT_F_PAD), jnp.float32),
        grid_spec=pltpu.PrefetchScalarGridSpec(
            num_scalar_prefetch=0,
            grid=grid,
            in_specs=[
                pl.BlockSpec((tile_b, IN_F_PAD), lambda i: (i, 0)),   # x tile (pipelined)
                pl.BlockSpec((IN_F_PAD, H), resident),                # W1
                pl.BlockSpec((1, H), resident),                       # b1
                pl.BlockSpec((H, H), resident),                       # W2
                pl.BlockSpec((1, H), resident),                       # b2
                pl.BlockSpec((H, OUT_F_PAD), resident),               # W3 (padded)
                pl.BlockSpec((1, OUT_F_PAD), resident),               # b3 (padded)
            ],
            out_specs=pl.BlockSpec((tile_b, OUT_F_PAD), lambda i: (i, 0)),
        ),
        compiler_params=pltpu.CompilerParams(
            dimension_semantics=("parallel",),   # shard batch tiles across v7x's 2 TCs
        ),
        cost_estimate=cost,
    )(x_p, w1, b1, w2, b2, w3, b3)

    return out_padded[:B, :OUT_F]


def init_params(key):
    """PyTorch nn.Linear-style init (uniform +-1/sqrt(fan_in)); weights stored
    as bf16 (in, out) with lane-friendly padding, biases as f32 (1, out)."""
    def linear_init(k, fan_in, fan_out, pad_in=0, pad_out=0):
        kw, kb = jax.random.split(k)
        bound = 1.0 / jnp.sqrt(jnp.float32(fan_in))
        w = jax.random.uniform(kw, (fan_in, fan_out), jnp.float32, -bound, bound)
        b = jax.random.uniform(kb, (1, fan_out), jnp.float32, -bound, bound)
        if pad_in:
            w = jnp.pad(w, ((0, pad_in), (0, 0)))                       # zero K rows
        if pad_out:
            w = jnp.pad(w, ((0, 0), (0, pad_out)))                      # zero out cols
            b = jnp.pad(b, ((0, 0), (0, pad_out)),
                        constant_values=NEG_PAD_BIAS)                   # -1e30 bias
        return w.astype(jnp.bfloat16), b

    k1, k2, k3 = jax.random.split(key, 3)
    w1, b1 = linear_init(k1, IN_F, H, pad_in=IN_F_PAD - IN_F)
    w2, b2 = linear_init(k2, H, H)
    w3, b3 = linear_init(k3, H, OUT_F, pad_out=OUT_F_PAD - OUT_F)
    return w1, b1, w2, b2, w3, b3


def reference_forward(x, params):
    """Pure-JAX reference with the same bf16-operand / f32-accum math."""
    w1, b1, w2, b2, w3, b3 = params
    x_p = jnp.pad(x, ((0, 0), (0, IN_F_PAD - IN_F))).astype(jnp.bfloat16)
    h1 = jnp.maximum(jnp.dot(x_p, w1, preferred_element_type=jnp.float32) + b1, 0.0)
    h2 = jnp.maximum(jnp.dot(h1.astype(jnp.bfloat16), w2,
                             preferred_element_type=jnp.float32) + b2, 0.0)
    logits = jnp.dot(h2.astype(jnp.bfloat16), w3,
                     preferred_element_type=jnp.float32) + b3
    return jax.nn.log_softmax(logits, axis=-1)[:, :OUT_F]


if __name__ == "__main__":
    key = jax.random.PRNGKey(0)
    kx, kp = jax.random.split(key)

    B = 8
    x = jax.random.normal(kx, (B, IN_F), jnp.float32)   # flattened MNIST-like input
    params = init_params(kp)

    out = jax.block_until_ready(linear_mnist_forward(x, params))
    ref = reference_forward(x, params)

    assert out.shape == (B, OUT_F)
    assert jnp.allclose(out, ref, atol=2e-3, rtol=2e-3), "mismatch vs JAX reference"
    # log-probs sanity: each row should (approximately) sum to 1 after exp
    assert jnp.allclose(jnp.sum(jnp.exp(out), axis=-1), 1.0, atol=1e-3)

    print("KERNEL_OK")
</pallas_src>

<mosaic_0001>
module attributes {stable_mosaic.version = 11 : i64} {
  func.func @mlp_logsoftmax_kernel(%arg0: i32, %arg1: memref<8x896xf32, #tpu.memory_space<vmem>>, %arg2: memref<896x128xbf16, #tpu.memory_space<vmem>>, %arg3: memref<1x128xf32, #tpu.memory_space<vmem>>, %arg4: memref<128x128xbf16, #tpu.memory_space<vmem>>, %arg5: memref<1x128xf32, #tpu.memory_space<vmem>>, %arg6: memref<128x128xbf16, #tpu.memory_space<vmem>>, %arg7: memref<1x128xf32, #tpu.memory_space<vmem>>, %arg8: memref<8x128xf32, #tpu.memory_space<vmem>>) attributes {dimension_semantics = [#tpu.dimension_semantics<parallel>], iteration_bounds = array<i64: 1>, scalar_prefetch = 0 : i64, scratch_operands = 0 : i64, tpu.core_type = #tpu.core_type<tc>, window_params = [{transform_indices = @transform_0, window_bounds = array<i64: 8, 896>}, {pipeline_mode = #tpu.pipeline_mode<synchronous>, transform_indices = @transform_1, window_bounds = array<i64: 896, 128>}, {pipeline_mode = #tpu.pipeline_mode<synchronous>, transform_indices = @transform_2, window_bounds = array<i64: 1, 128>}, {pipeline_mode = #tpu.pipeline_mode<synchronous>, transform_indices = @transform_3, window_bounds = array<i64: 128, 128>}, {pipeline_mode = #tpu.pipeline_mode<synchronous>, transform_indices = @transform_4, window_bounds = array<i64: 1, 128>}, {pipeline_mode = #tpu.pipeline_mode<synchronous>, transform_indices = @transform_5, window_bounds = array<i64: 128, 128>}, {pipeline_mode = #tpu.pipeline_mode<synchronous>, transform_indices = @transform_6, window_bounds = array<i64: 1, 128>}, {transform_indices = @transform_7, window_bounds = array<i64: 8, 128>}]} {
    %c0 = arith.constant 0 : index
    %c0_0 = arith.constant 0 : index
    %0 = vector.load %arg1[%c0, %c0_0] : memref<8x896xf32, #tpu.memory_space<vmem>>, vector<8x896xf32>
    %1 = arith.truncf %0 : vector<8x896xf32> to vector<8x896xbf16>
    %c0_1 = arith.constant 0 : index
    %c0_2 = arith.constant 0 : index
    %2 = vector.load %arg2[%c0_1, %c0_2] : memref<896x128xbf16, #tpu.memory_space<vmem>>, vector<896x128xbf16>
    %cst = arith.constant dense<0.000000e+00> : vector<8x128xf32>
    %3 = tpu.matmul %1, %2, %cst {dimension_numbers = #tpu.dot_dimension_numbers<[1], [0], [0], [1], [0, 0, 1, 1], [], []>} : vector<8x896xbf16>, vector<896x128xbf16>, vector<8x128xf32> -> vector<8x128xf32>
    %c0_3 = arith.constant 0 : index
    %c0_4 = arith.constant 0 : index
    %4 = vector.load %arg3[%c0_3, %c0_4] : memref<1x128xf32, #tpu.memory_space<vmem>>, vector<1x128xf32>
    %5 = vector.broadcast %4 : vector<1x128xf32> to vector<8x128xf32>
    %6 = arith.addf %3, %5 : vector<8x128xf32>
    %cst_5 = arith.constant 0.000000e+00 : f32
    %7 = vector.broadcast %cst_5 : f32 to vector<8x128xf32>
    %8 = arith.maximumf %6, %7 : vector<8x128xf32>
    %9 = arith.truncf %8 : vector<8x128xf32> to vector<8x128xbf16>
    %c0_6 = arith.constant 0 : index
    %c0_7 = arith.constant 0 : index
    %10 = vector.load %arg4[%c0_6, %c0_7] : memref<128x128xbf16, #tpu.memory_space<vmem>>, vector<128x128xbf16>
    %cst_8 = arith.constant dense<0.000000e+00> : vector<8x128xf32>
    %11 = tpu.matmul %9, %10, %cst_8 {dimension_numbers = #tpu.dot_dimension_numbers<[1], [0], [0], [1], [0, 0, 1, 1], [], []>} : vector<8x128xbf16>, vector<128x128xbf16>, vector<8x128xf32> -> vector<8x128xf32>
    %c0_9 = arith.constant 0 : index
    %c0_10 = arith.constant 0 : index
    %12 = vector.load %arg5[%c0_9, %c0_10] : memref<1x128xf32, #tpu.memory_space<vmem>>, vector<1x128xf32>
    %13 = vector.broadcast %12 : vector<1x128xf32> to vector<8x128xf32>
    %14 = arith.addf %11, %13 : vector<8x128xf32>
    %cst_11 = arith.constant 0.000000e+00 : f32
    %15 = vector.broadcast %cst_11 : f32 to vector<8x128xf32>
    %16 = arith.maximumf %14, %15 : vector<8x128xf32>
    %17 = arith.truncf %16 : vector<8x128xf32> to vector<8x128xbf16>
    %c0_12 = arith.constant 0 : index
    %c0_13 = arith.constant 0 : index
    %18 = vector.load %arg6[%c0_12, %c0_13] : memref<128x128xbf16, #tpu.memory_space<vmem>>, vector<128x128xbf16>
    %cst_14 = arith.constant dense<0.000000e+00> : vector<8x128xf32>
    %19 = tpu.matmul %17, %18, %cst_14 {dimension_numbers = #tpu.dot_dimension_numbers<[1], [0], [0], [1], [0, 0, 1, 1], [], []>} : vector<8x128xbf16>, vector<128x128xbf16>, vector<8x128xf32> -> vector<8x128xf32>
    %c0_15 = arith.constant 0 : index
    %c0_16 = arith.constant 0 : index
    %20 = vector.load %arg7[%c0_15, %c0_16] : memref<1x128xf32, #tpu.memory_space<vmem>>, vector<1x128xf32>
    %21 = vector.broadcast %20 : vector<1x128xf32> to vector<8x128xf32>
    %22 = arith.addf %19, %21 : vector<8x128xf32>
    %cst_17 = arith.constant dense<0xFF800000> : vector<8xf32>
    %23 = vector.multi_reduction <maximumf>, %22, %cst_17 [1] : vector<8x128xf32> to vector<8xf32>
    %24 = vector.shape_cast %23 : vector<8xf32> to vector<8x1xf32>
    %25 = vector.broadcast %24 : vector<8x1xf32> to vector<8x128xf32>
    %26 = arith.subf %22, %25 : vector<8x128xf32>
    %27 = math.exp %26 : vector<8x128xf32>
    %cst_18 = arith.constant dense<0.000000e+00> : vector<8xf32>
    %28 = vector.multi_reduction <add>, %27, %cst_18 [1] : vector<8x128xf32> to vector<8xf32>
    %29 = vector.shape_cast %28 : vector<8xf32> to vector<8x1xf32>
    %30 = math.log %29 : vector<8x1xf32>
    %31 = vector.broadcast %30 : vector<8x1xf32> to vector<8x128xf32>
    %32 = arith.subf %26, %31 : vector<8x128xf32>
    %c0_19 = arith.constant 0 : index
    %c0_20 = arith.constant 0 : index
    %33 = vector.load %arg8[%c0_19, %c0_20] : memref<8x128xf32, #tpu.memory_space<vmem>>, vector<8x128xf32>
    tpu.vector_store %arg8[%c0_19, %c0_20], %32 {strides = array<i32>} : memref<8x128xf32, #tpu.memory_space<vmem>>, vector<8x128xf32>,
    return
  }
  func.func @transform_0(%arg0: i32) -> (i32, i32) {
    %c0_i32 = arith.constant 0 : i32
    %c0_i32_0 = arith.constant 0 : i32
    return %arg0, %c0_i32 : i32, i32
  }
  func.func @transform_1(%arg0: i32) -> (i32, i32) {
    %c0_i32 = arith.constant 0 : i32
    %c0_i32_0 = arith.constant 0 : i32
    %c0_i32_1 = arith.constant 0 : i32
    return %c0_i32, %c0_i32_0 : i32, i32
  }
  func.func @transform_2(%arg0: i32) -> (i32, i32) {
    %c0_i32 = arith.constant 0 : i32
    %c0_i32_0 = arith.constant 0 : i32
    %c0_i32_1 = arith.constant 0 : i32
    return %c0_i32, %c0_i32_0 : i32, i32
  }
  func.func @transform_3(%arg0: i32) -> (i32, i32) {
    %c0_i32 = arith.constant 0 : i32
    %c0_i32_0 = arith.constant 0 : i32
    %c0_i32_1 = arith.constant 0 : i32
    return %c0_i32, %c0_i32_0 : i32, i32
  }
  func.func @transform_4(%arg0: i32) -> (i32, i32) {
    %c0_i32 = arith.constant 0 : i32
    %c0_i32_0 = arith.constant 0 : i32
    %c0_i32_1 = arith.constant 0 : i32
    return %c0_i32, %c0_i32_0 : i32, i32
  }
  func.func @transform_5(%arg0: i32) -> (i32, i32) {
    %c0_i32 = arith.constant 0 : i32
    %c0_i32_0 = arith.constant 0 : i32
    %c0_i32_1 = arith.constant 0 : i32
    return %c0_i32, %c0_i32_0 : i32, i32
  }
  func.func @transform_6(%arg0: i32) -> (i32, i32) {
    %c0_i32 = arith.constant 0 : i32
    %c0_i32_0 = arith.constant 0 : i32
    %c0_i32_1 = arith.constant 0 : i32
    return %c0_i32, %c0_i32_0 : i32, i32
  }
  func.func @transform_7(%arg0: i32) -> (i32, i32) {
    %c0_i32 = arith.constant 0 : i32
    %c0_i32_0 = arith.constant 0 : i32
    return %arg0, %c0_i32 : i32, i32
  }
}

</mosaic_0001>

<llo_original>
// kernel: tpu_custom_call.1
$region0: #{tpu_custom_call.1}
  #allocation0 [shape = 'u32[]', space=smem, size = 0x4, offset = 0x4, fixed_abs, tag = 'smem constant byte address 0x4 - core index']
  #allocation1 [shape = 'u32[144,128]{1,0:T(1,128)}', space=vmem, size = 0x12000, scoped, tag = 'internal scratch']
  %s0 = inlined_call_operand.hbm [shape: f32[8,896], index: 0, kind: input, shape index: {}]
  %s1 = inlined_call_operand.hbm [shape: bf16[896,128], index: 1, kind: input, shape index: {}]
  %s2 = inlined_call_operand.vmem [shape: f32[1,128], index: 2, kind: input, shape index: {}]
  %s3 = inlined_call_operand.hbm [shape: bf16[128,128], index: 3, kind: input, shape index: {}]
  %s4 = inlined_call_operand.vmem [shape: f32[1,128], index: 4, kind: input, shape index: {}]
  %s5 = inlined_call_operand.hbm [shape: bf16[128,128], index: 5, kind: input, shape index: {}]
  %s6 = inlined_call_operand.vmem [shape: f32[1,128], index: 6, kind: input, shape index: {}]
  %s7 = inlined_call_operand.hbm [shape: f32[8,128], index: 7, kind: output, shape index: {}]
  %s8 = sld [smem:[#allocation0]]
  $region54: #{tpu_custom_call.1} parent=0
    _
  %s10 = ssub.s32 1, %s8
  %s11 = scalar_select 0, %s10, %s8
  $region1: #{tpu_custom_call.1} parent=0
    #allocation2 [shape = 'u8[28672]{0}', space=vmem, size = 0x7000, scoped, tag = 'input window, operand 0, single buffered']
    #allocation3 [shape = 's32[1]{0}', space=sflag, size = 0x4, scoped, tag = 'scoped memory for tpu_custom_call.1']
    #allocation4 [shape = 's32[1]{0}', space=sflag, size = 0x4, scoped, tag = 'scoped memory for tpu_custom_call.1']
    #allocation5 [shape = 'u8[229376]{0}', space=vmem, size = 0x38000, scoped, tag = 'input window, operand 1, single buffered']
    #allocation6 [shape = 's32[1]{0}', space=sflag, size = 0x4, scoped, tag = 'scoped memory for tpu_custom_call.1']
    #allocation7 [shape = 'u8[32768]{0}', space=vmem, size = 0x8000, scoped, tag = 'input window, operand 3, single buffered']
    #allocation8 [shape = 'u8[32768]{0}', space=vmem, size = 0x8000, scoped, tag = 'input window, operand 5, single buffered']
    #allocation9 [shape = 's32[1]{0}', space=sflag, size = 0x4, scoped, tag = 'scoped memory for tpu_custom_call.1']
    #allocation10 [shape = 'u8[4096]{0}', space=vmem, size = 0x1000, scoped, tag = 'output window, operand 0, single buffered']
    %12 = vsyncpa [#allocation3], 0
    %13 = vsyncpa [#allocation6], 0
    %14 = vsyncpa [#allocation9], 0
    %15 = vsyncpa [#allocation4], 0
    // Predicated region
    $region2: #{tpu_custom_call.1} parent=1 // pred_check
      _
    $region3: #{tpu_custom_call.1} parent=1 // pred_check_branch
      %17 = sbr.rel (0) target = $region5
    $region4: #{tpu_custom_call.1} parent=1 // pred_region
      %s19 = ssub.s32 896, 896
      %20 = vsyncadd [#allocation3], %s19
      %s22 = sshll.u32 [#allocation2], 4
      %s23 = int_to_ptr.vmem [resolvable:$true] %s22
      %25 = dma.hbm_to_vmem [thread:$0]  %s0, 896, %s23, [#allocation3]
    $region5: #{tpu_custom_call.1} parent=1 // pred_fallthru
      _
    // Predicated region
    $region6: #{tpu_custom_call.1} parent=1 // pred_check
      _
    $region7: #{tpu_custom_call.1} parent=1 // pred_check_branch
      %27 = sbr.rel (0) target = $region9
    $region8: #{tpu_custom_call.1} parent=1 // pred_region
      %s29 = ssub.s32 7168, 7168
      %30 = vsyncadd [#allocation6], %s29
      %s31 = sshll.u32 [#allocation5], 4
      %s32 = int_to_ptr.vmem [resolvable:$true] %s31
      %37 = dma.hbm_to_vmem [thread:$0]  %s1, 7168, %s32, [#allocation6], 64, 64, 4
    $region9: #{tpu_custom_call.1} parent=1 // pred_fallthru
      _
    // Predicated region
    $region10: #{tpu_custom_call.1} parent=1 // pred_check
      _
    $region11: #{tpu_custom_call.1} parent=1 // pred_check_branch
      %39 = sbr.rel (0) target = $region13
    $region12: #{tpu_custom_call.1} parent=1 // pred_region
      _
    $region13: #{tpu_custom_call.1} parent=1 // pred_fallthru
      _
    // Predicated region
    $region14: #{tpu_custom_call.1} parent=1 // pred_check
      _
    $region15: #{tpu_custom_call.1} parent=1 // pred_check_branch
      %41 = sbr.rel (0) target = $region17
    $region16: #{tpu_custom_call.1} parent=1 // pred_region
      %s43 = ssub.s32 1024, 1024
      %44 = vsyncadd [#allocation6], %s43
      %s45 = sshll.u32 [#allocation7], 4
      %s46 = int_to_ptr.vmem [resolvable:$true] %s45
      %51 = dma.hbm_to_vmem [thread:$0]  %s3, 1024, %s46, [#allocation6], 64, 64, 4
    $region17: #{tpu_custom_call.1} parent=1 // pred_fallthru
      _
    // Predicated region
    $region18: #{tpu_custom_call.1} parent=1 // pred_check
      _
    $region19: #{tpu_custom_call.1} parent=1 // pred_check_branch
      %53 = sbr.rel (0) target = $region21
    $region20: #{tpu_custom_call.1} parent=1 // pred_region
      _
    $region21: #{tpu_custom_call.1} parent=1 // pred_fallthru
      _
    // Predicated region
    $region22: #{tpu_custom_call.1} parent=1 // pred_check
      _
    $region23: #{tpu_custom_call.1} parent=1 // pred_check_branch
      %55 = sbr.rel (0) target = $region25
    $region24: #{tpu_custom_call.1} parent=1 // pred_region
      %s57 = ssub.s32 1024, 1024
      %58 = vsyncadd [#allocation9], %s57
      %s59 = sshll.u32 [#allocation8], 4
      %s60 = int_to_ptr.vmem [resolvable:$true] %s59
      %65 = dma.hbm_to_vmem [thread:$0]  %s5, 1024, %s60, [#allocation9], 64, 64, 4
    $region25: #{tpu_custom_call.1} parent=1 // pred_fallthru
      _
    // Predicated region
    $region26: #{tpu_custom_call.1} parent=1 // pred_check
      _
    $region27: #{tpu_custom_call.1} parent=1 // pred_check_branch
      %67 = sbr.rel (0) target = $region29
    $region28: #{tpu_custom_call.1} parent=1 // pred_region
      _
    $region29: #{tpu_custom_call.1} parent=1 // pred_fallthru
      _
    // Predicated region
    $region30: #{tpu_custom_call.1} parent=1 // pred_check
      _
    $region31: #{tpu_custom_call.1} parent=1 // pred_check_branch
      %69 = sbr.rel (0) target = $region33
    $region32: #{tpu_custom_call.1} parent=1 // pred_region
      %70 = dma.done [#allocation3], 896
    $region33: #{tpu_custom_call.1} parent=1 // pred_fallthru
      _
    // Predicated region
    $region34: #{tpu_custom_call.1} parent=1 // pred_check
      _
    $region35: #{tpu_custom_call.1} parent=1 // pred_check_branch
      %72 = sbr.rel (0) target = $region37
    $region36: #{tpu_custom_call.1} parent=1 // pred_region
      %73 = dma.done [#allocation6], 7168
    $region37: #{tpu_custom_call.1} parent=1 // pred_fallthru
      _
    // Predicated region
    $region38: #{tpu_custom_call.1} parent=1 // pred_check
      _
    $region39: #{tpu_custom_call.1} parent=1 // pred_check_branch
      %75 = sbr.rel (0) target = $region41
    $region40: #{tpu_custom_call.1} parent=1 // pred_region
      %76 = dma.done [#allocation6], 1024
    $region41: #{tpu_custom_call.1} parent=1 // pred_fallthru
      _
    // Predicated region
    $region42: #{tpu_custom_call.1} parent=1 // pred_check
      _
    $region43: #{tpu_custom_call.1} parent=1 // pred_check_branch
      %78 = sbr.rel (0) target = $region45
    $region44: #{tpu_custom_call.1} parent=1 // pred_region
      %79 = dma.done [#allocation9], 1024
    $region45: #{tpu_custom_call.1} parent=1 // pred_fallthru
      _
    %v81 = vld [vmem:[#allocation2] sm:$0xff]
    %v82 = vld [vmem:[#allocation2 + $0x8] sm:$0xff]
    %v83 = vld [vmem:[#allocation2 + $0x10] sm:$0xff]
    %v84 = vld [vmem:[#allocation2 + $0x18] sm:$0xff]
    %v85 = vld [vmem:[#allocation2 + $0x20] sm:$0xff]
    %v86 = vld [vmem:[#allocation2 + $0x28] sm:$0xff]
    %v87 = vld [vmem:[#allocation2 + $0x30] sm:$0xff]
    %v88 = vpack.c.bf16 %v81, %v81
    %v89 = vpack.c.bf16 %v82, %v82
    %v90 = vpack.c.bf16 %v83, %v83
    %v91 = vpack.c.bf16 %v84, %v84
    %v92 = vpack.c.bf16 %v85, %v85
    %v93 = vpack.c.bf16 %v86, %v86
    %v94 = vpack.c.bf16 %v87, %v87
    %v95 = vld [vmem:[#allocation5] sm:$0xf]
    %v96 = vld [vmem:[#allocation5 + $0x4] sm:$0xf]
    %v97 = vld [vmem:[#allocation5 + $0x8] sm:$0xf]
    %v98 = vld [vmem:[#allocation5 + $0xc] sm:$0xf]
    %v99 = vld [vmem:[#allocation5 + $0x10] sm:$0xf]
    %v100 = vld [vmem:[#allocation5 + $0x14] sm:$0xf]
    %v101 = vld [vmem:[#allocation5 + $0x18] sm:$0xf]
    %v102 = vld [vmem:[#allocation5 + $0x1c] sm:$0xf]
    %v103 = vld [vmem:[#allocation5 + $0x20] sm:$0xf]
    %v104 = vld [vmem:[#allocation5 + $0x24] sm:$0xf]
    %v105 = vld [vmem:[#allocation5 + $0x28] sm:$0xf]
    %v106 = vld [vmem:[#allocation5 + $0x2c] sm:$0xf]
    %v107 = vld [vmem:[#allocation5 + $0x30] sm:$0xf]
    %v108 = vld [vmem:[#allocation5 + $0x34] sm:$0xf]
    %v109 = vld [vmem:[#allocation5 + $0x38] sm:$0xf]
    %v110 = vld [vmem:[#allocation5 + $0x3c] sm:$0xf]
    %v111 = vld [vmem:[#allocation5 + $0x40] sm:$0xf]
    %v112 = vld [vmem:[#allocation5 + $0x44] sm:$0xf]
    %v113 = vld [vmem:[#allocation5 + $0x48] sm:$0xf]
    %v114 = vld [vmem:[#allocation5 + $0x4c] sm:$0xf]
    %v115 = vld [vmem:[#allocation5 + $0x50] sm:$0xf]
    %v116 = vld [vmem:[#allocation5 + $0x54] sm:$0xf]
    %v117 = vld [vmem:[#allocation5 + $0x58] sm:$0xf]
    %v118 = vld [vmem:[#allocation5 + $0x5c] sm:$0xf]
    %v119 = vld [vmem:[#allocation5 + $0x60] sm:$0xf]
    %v120 = vld [vmem:[#allocation5 + $0x64] sm:$0xf]
    %v121 = vld [vmem:[#allocation5 + $0x68] sm:$0xf]
    %v122 = vld [vmem:[#allocation5 + $0x6c] sm:$0xf]
    %v123 = vld [vmem:[#allocation5 + $0x70] sm:$0xf]
    %v124 = vld [vmem:[#allocation5 + $0x74] sm:$0xf]
    %v125 = vld [vmem:[#allocation5 + $0x78] sm:$0xf]
    %v126 = vld [vmem:[#allocation5 + $0x7c] sm:$0xf]
    %v127 = vld [vmem:[#allocation5 + $0x80] sm:$0xf]
    %v128 = vld [vmem:[#allocation5 + $0x84] sm:$0xf]
    %v129 = vld [vmem:[#allocation5 + $0x88] sm:$0xf]
    %v130 = vld [vmem:[#allocation5 + $0x8c] sm:$0xf]
    %v131 = vld [vmem:[#allocation5 + $0x90] sm:$0xf]
    %v132 = vld [vmem:[#allocation5 + $0x94] sm:$0xf]
    %v133 = vld [vmem:[#allocation5 + $0x98] sm:$0xf]
    %v134 = vld [vmem:[#allocation5 + $0x9c] sm:$0xf]
    %v135 = vld [vmem:[#allocation5 + $0xa0] sm:$0xf]
    %v136 = vld [vmem:[#allocation5 + $0xa4] sm:$0xf]
    %v137 = vld [vmem:[#allocation5 + $0xa8] sm:$0xf]
    %v138 = vld [vmem:[#allocation5 + $0xac] sm:$0xf]
    %v139 = vld [vmem:[#allocation5 + $0xb0] sm:$0xf]
    %v140 = vld [vmem:[#allocation5 + $0xb4] sm:$0xf]
    %v141 = vld [vmem:[#allocation5 + $0xb8] sm:$0xf]
    %v142 = vld [vmem:[#allocation5 + $0xbc] sm:$0xf]
    %v143 = vld [vmem:[#allocation5 + $0xc0] sm:$0xf]
    %v144 = vld [vmem:[#allocation5 + $0xc4] sm:$0xf]
    %v145 = vld [vmem:[#allocation5 + $0xc8] sm:$0xf]
    %v146 = vld [vmem:[#allocation5 + $0xcc] sm:$0xf]
    %v147 = vld [vmem:[#allocation5 + $0xd0] sm:$0xf]
    %v148 = vld [vmem:[#allocation5 + $0xd4] sm:$0xf]
    %v149 = vld [vmem:[#allocation5 + $0xd8] sm:$0xf]
    %v150 = vld [vmem:[#allocation5 + $0xdc] sm:$0xf]
    %v151 = vld [vmem:[#allocation5 + $0xe0] sm:$0xf]
    %v152 = vld [vmem:[#allocation5 + $0xe4] sm:$0xf]
    %v153 = vld [vmem:[#allocation5 + $0xe8] sm:$0xf]
    %v154 = vld [vmem:[#allocation5 + $0xec] sm:$0xf]
    %v155 = vld [vmem:[#allocation5 + $0xf0] sm:$0xf]
    %v156 = vld [vmem:[#allocation5 + $0xf4] sm:$0xf]
    %v157 = vld [vmem:[#allocation5 + $0xf8] sm:$0xf]
    %v158 = vld [vmem:[#allocation5 + $0xfc] sm:$0xf]
    %v159 = vld [vmem:[#allocation5 + $0x100] sm:$0xf]
    %v160 = vld [vmem:[#allocation5 + $0x104] sm:$0xf]
    %v161 = vld [vmem:[#allocation5 + $0x108] sm:$0xf]
    %v162 = vld [vmem:[#allocation5 + $0x10c] sm:$0xf]
    %v163 = vld [vmem:[#allocation5 + $0x110] sm:$0xf]
    %v164 = vld [vmem:[#allocation5 + $0x114] sm:$0xf]
    %v165 = vld [vmem:[#allocation5 + $0x118] sm:$0xf]
    %v166 = vld [vmem:[#allocation5 + $0x11c] sm:$0xf]
    %v167 = vld [vmem:[#allocation5 + $0x120] sm:$0xf]
    %v168 = vld [vmem:[#allocation5 + $0x124] sm:$0xf]
    %v169 = vld [vmem:[#allocation5 + $0x128] sm:$0xf]
    %v170 = vld [vmem:[#allocation5 + $0x12c] sm:$0xf]
    %v171 = vld [vmem:[#allocation5 + $0x130] sm:$0xf]
    %v172 = vld [vmem:[#allocation5 + $0x134] sm:$0xf]
    %v173 = vld [vmem:[#allocation5 + $0x138] sm:$0xf]
    %v174 = vld [vmem:[#allocation5 + $0x13c] sm:$0xf]
    %v175 = vld [vmem:[#allocation5 + $0x140] sm:$0xf]
    %v176 = vld [vmem:[#allocation5 + $0x144] sm:$0xf]
    %v177 = vld [vmem:[#allocation5 + $0x148] sm:$0xf]
    %v178 = vld [vmem:[#allocation5 + $0x14c] sm:$0xf]
    %v179 = vld [vmem:[#allocation5 + $0x150] sm:$0xf]
    %v180 = vld [vmem:[#allocation5 + $0x154] sm:$0xf]
    %v181 = vld [vmem:[#allocation5 + $0x158] sm:$0xf]
    %v182 = vld [vmem:[#allocation5 + $0x15c] sm:$0xf]
    %v183 = vld [vmem:[#allocation5 + $0x160] sm:$0xf]
    %v184 = vld [vmem:[#allocation5 + $0x164] sm:$0xf]
    %v185 = vld [vmem:[#allocation5 + $0x168] sm:$0xf]
    %v186 = vld [vmem:[#allocation5 + $0x16c] sm:$0xf]
    %v187 = vld [vmem:[#allocation5 + $0x170] sm:$0xf]
    %v188 = vld [vmem:[#allocation5 + $0x174] sm:$0xf]
    %v189 = vld [vmem:[#allocation5 + $0x178] sm:$0xf]
    %v190 = vld [vmem:[#allocation5 + $0x17c] sm:$0xf]
    %v191 = vld [vmem:[#allocation5 + $0x180] sm:$0xf]
    %v192 = vld [vmem:[#allocation5 + $0x184] sm:$0xf]
    %v193 = vld [vmem:[#allocation5 + $0x188] sm:$0xf]
    %v194 = vld [vmem:[#allocation5 + $0x18c] sm:$0xf]
    %v195 = vld [vmem:[#allocation5 + $0x190] sm:$0xf]
    %v196 = vld [vmem:[#allocation5 + $0x194] sm:$0xf]
    %v197 = vld [vmem:[#allocation5 + $0x198] sm:$0xf]
    %v198 = vld [vmem:[#allocation5 + $0x19c] sm:$0xf]
    %v199 = vld [vmem:[#allocation5 + $0x1a0] sm:$0xf]
    %v200 = vld [vmem:[#allocation5 + $0x1a4] sm:$0xf]
    %v201 = vld [vmem:[#allocation5 + $0x1a8] sm:$0xf]
    %v202 = vld [vmem:[#allocation5 + $0x1ac] sm:$0xf]
    %v203 = vld [vmem:[#allocation5 + $0x1b0] sm:$0xf]
    %v204 = vld [vmem:[#allocation5 + $0x1b4] sm:$0xf]
    %v205 = vld [vmem:[#allocation5 + $0x1b8] sm:$0xf]
    %v206 = vld [vmem:[#allocation5 + $0x1bc] sm:$0xf]
    %v207 = vld [vmem:[%s2] sm:$0x1]
    %v209 = vlaneseq
    %v210 = vshrl.u32 %v209, 7
    %v211 = vsub.s32 0, %v210
    %v212 = vrot.slane %v207, %v211
    %v326 = vunpack.c.l.b16 %v95
    %v327 = vunpack.c.l.b16 %v96
    %v328 = vunpack.c.l.b16 %v97
    %v329 = vunpack.c.l.b16 %v98
    %v330 = vunpack.c.l.b16 %v99
    %v331 = vunpack.c.l.b16 %v100
    %v332 = vunpack.c.l.b16 %v101
    %v333 = vunpack.c.l.b16 %v102
    %v334 = vunpack.c.l.b16 %v103
    %v335 = vunpack.c.l.b16 %v104
    %v336 = vunpack.c.l.b16 %v105
    %v337 = vunpack.c.l.b16 %v106
    %v338 = vunpack.c.l.b16 %v107
    %v339 = vunpack.c.l.b16 %v108
    %v340 = vunpack.c.l.b16 %v109
    %v341 = vunpack.c.l.b16 %v110
    %v342 = vunpack.c.l.b16 %v111
    %v343 = vunpack.c.l.b16 %v112
    %v344 = vunpack.c.l.b16 %v113
    %v345 = vunpack.c.l.b16 %v114
    %v346 = vunpack.c.l.b16 %v115
    %v347 = vunpack.c.l.b16 %v116
    %v348 = vunpack.c.l.b16 %v117
    %v349 = vunpack.c.l.b16 %v118
    %v350 = vunpack.c.l.b16 %v119
    %v351 = vunpack.c.l.b16 %v120
    %v352 = vunpack.c.l.b16 %v121
    %v353 = vunpack.c.l.b16 %v122
    %v354 = vunpack.c.l.b16 %v123
    %v355 = vunpack.c.l.b16 %v124
    %v356 = vunpack.c.l.b16 %v125
    %v357 = vunpack.c.l.b16 %v126
    %v358 = vunpack.c.l.b16 %v127
    %v359 = vunpack.c.l.b16 %v128
    %v360 = vunpack.c.l.b16 %v129
    %v361 = vunpack.c.l.b16 %v130
    %v362 = vunpack.c.l.b16 %v131
    %v363 = vunpack.c.l.b16 %v132
    %v364 = vunpack.c.l.b16 %v133
    %v365 = vunpack.c.l.b16 %v134
    %v366 = vunpack.c.l.b16 %v135
    %v367 = vunpack.c.l.b16 %v136
    %v368 = vunpack.c.l.b16 %v137
    %v369 = vunpack.c.l.b16 %v138
    %v370 = vunpack.c.l.b16 %v139
    %v371 = vunpack.c.l.b16 %v140
    %v372 = vunpack.c.l.b16 %v141
    %v373 = vunpack.c.l.b16 %v142
    %v374 = vunpack.c.l.b16 %v143
    %v375 = vunpack.c.l.b16 %v144
    %v376 = vunpack.c.l.b16 %v145
    %v377 = vunpack.c.l.b16 %v146
    %v378 = vunpack.c.l.b16 %v147
    %v379 = vunpack.c.l.b16 %v148
    %v380 = vunpack.c.l.b16 %v149
    %v381 = vunpack.c.l.b16 %v150
    %v382 = vunpack.c.l.b16 %v151
    %v383 = vunpack.c.l.b16 %v152
    %v384 = vunpack.c.l.b16 %v153
    %v385 = vunpack.c.l.b16 %v154
    %v386 = vunpack.c.l.b16 %v155
    %v387 = vunpack.c.l.b16 %v156
    %v388 = vunpack.c.l.b16 %v157
    %v389 = vunpack.c.l.b16 %v158
    %v390 = vunpack.c.l.b16 %v159
    %v391 = vunpack.c.l.b16 %v160
    %v392 = vunpack.c.l.b16 %v161
    %v393 = vunpack.c.l.b16 %v162
    %v394 = vunpack.c.l.b16 %v163
    %v395 = vunpack.c.l.b16 %v164
    %v396 = vunpack.c.l.b16 %v165
    %v397 = vunpack.c.l.b16 %v166
    %v398 = vunpack.c.l.b16 %v167
    %v399 = vunpack.c.l.b16 %v168
    %v400 = vunpack.c.l.b16 %v169
    %v401 = vunpack.c.l.b16 %v170
    %v402 = vunpack.c.l.b16 %v171
    %v403 = vunpack.c.l.b16 %v172
    %v404 = vunpack.c.l.b16 %v173
    %v405 = vunpack.c.l.b16 %v174
    %v406 = vunpack.c.l.b16 %v175
    %v407 = vunpack.c.l.b16 %v176
    %v408 = vunpack.c.l.b16 %v177
    %v409 = vunpack.c.l.b16 %v178
    %v410 = vunpack.c.l.b16 %v179
    %v411 = vunpack.c.l.b16 %v180
    %v412 = vunpack.c.l.b16 %v181
    %v413 = vunpack.c.l.b16 %v182
    %v414 = vunpack.c.l.b16 %v183
    %v415 = vunpack.c.l.b16 %v184
    %v416 = vunpack.c.l.b16 %v185
    %v417 = vunpack.c.l.b16 %v186
    %v418 = vunpack.c.l.b16 %v187
    %v419 = vunpack.c.l.b16 %v188
    %v420 = vunpack.c.l.b16 %v189
    %v421 = vunpack.c.l.b16 %v190
    %v422 = vunpack.c.l.b16 %v191
    %v423 = vunpack.c.l.b16 %v192
    %v424 = vunpack.c.l.b16 %v193
    %v425 = vunpack.c.l.b16 %v194
    %v426 = vunpack.c.l.b16 %v195
    %v427 = vunpack.c.l.b16 %v196
    %v428 = vunpack.c.l.b16 %v197
    %v429 = vunpack.c.l.b16 %v198
    %v430 = vunpack.c.l.b16 %v199
    %v431 = vunpack.c.l.b16 %v200
    %v432 = vunpack.c.l.b16 %v201
    %v433 = vunpack.c.l.b16 %v202
    %v434 = vunpack.c.l.b16 %v203
    %v435 = vunpack.c.l.b16 %v204
    %v436 = vunpack.c.l.b16 %v205
    %v437 = vunpack.c.l.b16 %v206
    %v438 = vpack.c.b16 %v327, %v326
    %v439 = vpack.c.b16 %v329, %v328
    %v440 = vpack.c.b16 %v331, %v330
    %v441 = vpack.c.b16 %v333, %v332
    %v442 = vpack.c.b16 %v335, %v334
    %v443 = vpack.c.b16 %v337, %v336
    %v444 = vpack.c.b16 %v339, %v338
    %v445 = vpack.c.b16 %v341, %v340
    %v446 = vpack.c.b16 %v343, %v342
    %v447 = vpack.c.b16 %v345, %v344
    %v448 = vpack.c.b16 %v347, %v346
    %v449 = vpack.c.b16 %v349, %v348
    %v450 = vpack.c.b16 %v351, %v350
    %v451 = vpack.c.b16 %v353, %v352
    %v452 = vpack.c.b16 %v355, %v354
    %v453 = vpack.c.b16 %v357, %v356
    %v454 = vpack.c.b16 %v359, %v358
    %v455 = vpack.c.b16 %v361, %v360
    %v456 = vpack.c.b16 %v363, %v362
    %v457 = vpack.c.b16 %v365, %v364
    %v458 = vpack.c.b16 %v367, %v366
    %v459 = vpack.c.b16 %v369, %v368
    %v460 = vpack.c.b16 %v371, %v370
    %v461 = vpack.c.b16 %v373, %v372
    %v462 = vpack.c.b16 %v375, %v374
    %v463 = vpack.c.b16 %v377, %v376
    %v464 = vpack.c.b16 %v379, %v378
    %v465 = vpack.c.b16 %v381, %v380
    %v466 = vpack.c.b16 %v383, %v382
    %v467 = vpack.c.b16 %v385, %v384
    %v468 = vpack.c.b16 %v387, %v386
    %v469 = vpack.c.b16 %v389, %v388
    %v470 = vpack.c.b16 %v391, %v390
    %v471 = vpack.c.b16 %v393, %v392
    %v472 = vpack.c.b16 %v395, %v394
    %v473 = vpack.c.b16 %v397, %v396
    %v474 = vpack.c.b16 %v399, %v398
    %v475 = vpack.c.b16 %v401, %v400
    %v476 = vpack.c.b16 %v403, %v402
    %v477 = vpack.c.b16 %v405, %v404
    %v478 = vpack.c.b16 %v407, %v406
    %v479 = vpack.c.b16 %v409, %v408
    %v480 = vpack.c.b16 %v411, %v410
    %v481 = vpack.c.b16 %v413, %v412
    %v482 = vpack.c.b16 %v415, %v414
    %v483 = vpack.c.b16 %v417, %v416
    %v484 = vpack.c.b16 %v419, %v418
    %v485 = vpack.c.b16 %v421, %v420
    %v486 = vpack.c.b16 %v423, %v422
    %v487 = vpack.c.b16 %v425, %v424
    %v488 = vpack.c.b16 %v427, %v426
    %v489 = vpack.c.b16 %v429, %v428
    %v490 = vpack.c.b16 %v431, %v430
    %v491 = vpack.c.b16 %v433, %v432
    %v492 = vpack.c.b16 %v435, %v434
    %v493 = vpack.c.b16 %v437, %v436
    %550 = vmatprep.subr.bf16.mxu0 0
    %551 = vmatpush1.bf16.msra.mxu0 %v438
    %552 = vmatprep.subr.bf16.mxu0 0
    %553 = vmatpush1.bf16.msra.mxu0 %v439
    %554 = vmatprep.subr.bf16.mxu0 0
    %555 = vmatpush1.bf16.msra.mxu0 %v440
    %556 = vmatprep.subr.bf16.mxu0 0
    %557 = vmatpush1.bf16.msra.mxu0 %v441
    %558 = vmatprep.subr.bf16.mxu0 0
    %559 = vmatpush1.bf16.msra.mxu0 %v442
    %560 = vmatprep.subr.bf16.mxu0 0
    %561 = vmatpush1.bf16.msra.mxu0 %v443
    %562 = vmatprep.subr.bf16.mxu0 0
    %563 = vmatpush1.bf16.msra.mxu0 %v444
    %564 = vmatprep.subr.bf16.mxu0 0
    %565 = vmatpush1.bf16.msra.mxu0 %v445
    %566 = vmatprep.subr.bf16.mxu0 0
    %567 = vmatpush1.bf16.msra.mxu0 %v446
    %568 = vmatprep.subr.bf16.mxu0 0
    %569 = vmatpush1.bf16.msra.mxu0 %v447
    %570 = vmatprep.subr.bf16.mxu0 0
    %571 = vmatpush1.bf16.msra.mxu0 %v448
    %572 = vmatprep.subr.bf16.mxu0 0
    %573 = vmatpush1.bf16.msra.mxu0 %v449
    %574 = vmatprep.subr.bf16.mxu0 0
    %575 = vmatpush1.bf16.msra.mxu0 %v450
    %576 = vmatprep.subr.bf16.mxu0 0
    %577 = vmatpush1.bf16.msra.mxu0 %v451
    %578 = vmatprep.subr.bf16.mxu0 0
    %579 = vmatpush1.bf16.msra.mxu0 %v452
    %580 = vmatprep.subr.bf16.mxu0 0
    %581 = vmatpush1.bf16.msra.mxu0 %v453
    %582 = vmatprep.mubr.bf16.mxu0 %v89
    %583 = vmatmul.mubr.bf16.gmra.mrb[0].mxu0 %v88
    %v584 = vpop.f32.mrb[0].mxu0
    %v585 = vadd.f32 %v212, %v584
    %v586 = vpop.f32.mrb[0].mxu0
    %v587 = vpop.f32.mrb[0].mxu0
    %v588 = vpop.f32.mrb[0].mxu0
    %589 = vdwg.mxu0
    %590 = vmatprep.subr.bf16.mxu0 0
    %591 = vmatpush1.bf16.msra.mxu0 %v454
    %592 = vmatprep.subr.bf16.mxu0 0
    %593 = vmatpush1.bf16.msra.mxu0 %v455
    %594 = vmatprep.subr.bf16.mxu0 0
    %595 = vmatpush1.bf16.msra.mxu0 %v456
    %596 = vmatprep.subr.bf16.mxu0 0
    %597 = vmatpush1.bf16.msra.mxu0 %v457
    %598 = vmatprep.subr.bf16.mxu0 0
    %599 = vmatpush1.bf16.msra.mxu0 %v458
    %600 = vmatprep.subr.bf16.mxu0 0
    %601 = vmatpush1.bf16.msra.mxu0 %v459
    %602 = vmatprep.subr.bf16.mxu0 0
    %603 = vmatpush1.bf16.msra.mxu0 %v460
    %604 = vmatprep.subr.bf16.mxu0 0
    %605 = vmatpush1.bf16.msra.mxu0 %v461
    %606 = vmatprep.subr.bf16.mxu0 0
    %607 = vmatpush1.bf16.msra.mxu0 %v462
    %608 = vmatprep.subr.bf16.mxu0 0
    %609 = vmatpush1.bf16.msra.mxu0 %v463
    %610 = vmatprep.subr.bf16.mxu0 0
    %611 = vmatpush1.bf16.msra.mxu0 %v464
    %612 = vmatprep.subr.bf16.mxu0 0
    %613 = vmatpush1.bf16.msra.mxu0 %v465
    %614 = vmatprep.subr.bf16.mxu0 0
    %615 = vmatpush1.bf16.msra.mxu0 %v466
    %616 = vmatprep.subr.bf16.mxu0 0
    %617 = vmatpush1.bf16.msra.mxu0 %v467
    %618 = vmatprep.subr.bf16.mxu0 0
    %619 = vmatpush1.bf16.msra.mxu0 %v468
    %620 = vmatprep.subr.bf16.mxu0 0
    %621 = vmatpush1.bf16.msra.mxu0 %v469
    %622 = vmatprep.mubr.bf16.mxu0 %v91
    %623 = vmatmul.mubr.bf16.gmra.mrb[0].mxu0 %v90
    %v624 = vpop.f32.mrb[0].mxu0
    %v625 = vadd.f32 %v585, %v624
    %v626 = vpop.f32.mrb[0].mxu0
    %v627 = vpop.f32.mrb[0].mxu0
    %v628 = vpop.f32.mrb[0].mxu0
    %629 = vdwg.mxu0
    %630 = vmatprep.subr.bf16.mxu0 0
    %631 = vmatpush1.bf16.msra.mxu0 %v470
    %632 = vmatprep.subr.bf16.mxu0 0
    %633 = vmatpush1.bf16.msra.mxu0 %v471
    %634 = vmatprep.subr.bf16.mxu0 0
    %635 = vmatpush1.bf16.msra.mxu0 %v472
    %636 = vmatprep.subr.bf16.mxu0 0
    %637 = vmatpush1.bf16.msra.mxu0 %v473
    %638 = vmatprep.subr.bf16.mxu0 0
    %639 = vmatpush1.bf16.msra.mxu0 %v474
    %640 = vmatprep.subr.bf16.mxu0 0
    %641 = vmatpush1.bf16.msra.mxu0 %v475
    %642 = vmatprep.subr.bf16.mxu0 0
    %643 = vmatpush1.bf16.msra.mxu0 %v476
    %644 = vmatprep.subr.bf16.mxu0 0
    %645 = vmatpush1.bf16.msra.mxu0 %v477
    %646 = vmatprep.subr.bf16.mxu0 0
    %647 = vmatpush1.bf16.msra.mxu0 %v478
    %648 = vmatprep.subr.bf16.mxu0 0
    %649 = vmatpush1.bf16.msra.mxu0 %v479
    %650 = vmatprep.subr.bf16.mxu0 0
    %651 = vmatpush1.bf16.msra.mxu0 %v480
    %652 = vmatprep.subr.bf16.mxu0 0
    %653 = vmatpush1.bf16.msra.mxu0 %v481
    %654 = vmatprep.subr.bf16.mxu0 0
    %655 = vmatpush1.bf16.msra.mxu0 %v482
    %656 = vmatprep.subr.bf16.mxu0 0
    %657 = vmatpush1.bf16.msra.mxu0 %v483
    %658 = vmatprep.subr.bf16.mxu0 0
    %659 = vmatpush1.bf16.msra.mxu0 %v484
    %660 = vmatprep.subr.bf16.mxu0 0
    %661 = vmatpush1.bf16.msra.mxu0 %v485
    %662 = vmatprep.mubr.bf16.mxu0 %v93
    %663 = vmatmul.mubr.bf16.gmra.mrb[0].mxu0 %v92
    %v664 = vpop.f32.mrb[0].mxu0
    %v665 = vadd.f32 %v625, %v664
    %v666 = vpop.f32.mrb[0].mxu0
    %v667 = vpop.f32.mrb[0].mxu0
    %v668 = vpop.f32.mrb[0].mxu0
    %669 = vdwg.mxu0
    %670 = vmatprep.subr.bf16.mxu0 0
    %671 = vmatpush1.bf16.msra.mxu0 %v486
    %672 = vmatprep.subr.bf16.mxu0 0
    %673 = vmatpush1.bf16.msra.mxu0 %v487
    %674 = vmatprep.subr.bf16.mxu0 0
    %675 = vmatpush1.bf16.msra.mxu0 %v488
    %676 = vmatprep.subr.bf16.mxu0 0
    %677 = vmatpush1.bf16.msra.mxu0 %v489
    %678 = vmatprep.subr.bf16.mxu0 0
    %679 = vmatpush1.bf16.msra.mxu0 %v490
    %680 = vmatprep.subr.bf16.mxu0 0
    %681 = vmatpush1.bf16.msra.mxu0 %v491
    %682 = vmatprep.subr.bf16.mxu0 0
    %683 = vmatpush1.bf16.msra.mxu0 %v492
    %684 = vmatprep.subr.bf16.mxu0 0
    %685 = vmatpush1.bf16.msra.mxu0 %v493
    %686 = vmatprep.subr.bf16.mxu0 0
    %687 = vmatpush1.bf16.msra.mxu0 0
    %688 = vmatprep.subr.bf16.mxu0 0
    %689 = vmatpush1.bf16.msra.mxu0 0
    %690 = vmatprep.subr.bf16.mxu0 0
    %691 = vmatpush1.bf16.msra.mxu0 0
    %692 = vmatprep.subr.bf16.mxu0 0
    %693 = vmatpush1.bf16.msra.mxu0 0
    %694 = vmatprep.subr.bf16.mxu0 0
    %695 = vmatpush1.bf16.msra.mxu0 0
    %696 = vmatprep.subr.bf16.mxu0 0
    %697 = vmatpush1.bf16.msra.mxu0 0
    %698 = vmatprep.subr.bf16.mxu0 0
    %699 = vmatpush1.bf16.msra.mxu0 0
    %700 = vmatprep.subr.bf16.mxu0 0
    %701 = vmatpush1.bf16.msra.mxu0 0
    %702 = vmatprep.mubr.bf16.mxu0 0
    %703 = vmatmul.mubr.bf16.gmra.mrb[0].mxu0 %v94
    %v704 = vpop.f32.mrb[0].mxu0
    %v705 = vadd.f32 %v665, %v704
    %v706 = vpop.f32.mrb[0].mxu0
    %v707 = vpop.f32.mrb[0].mxu0
    %v708 = vpop.f32.mrb[0].mxu0
    %709 = vdwg.mxu0
    %v710 = vmax.f32 %v705, 0.0
    %v711 = vpack.c.bf16 %v710, %v710
    %v712 = vld [vmem:[#allocation7] sm:$0xf]
    %v713 = vld [vmem:[#allocation7 + $0x4] sm:$0xf]
    %v714 = vld [vmem:[#allocation7 + $0x8] sm:$0xf]
    %v715 = vld [vmem:[#allocation7 + $0xc] sm:$0xf]
    %v716 = vld [vmem:[#allocation7 + $0x10] sm:$0xf]
    %v717 = vld [vmem:[#allocation7 + $0x14] sm:$0xf]
    %v718 = vld [vmem:[#allocation7 + $0x18] sm:$0xf]
    %v719 = vld [vmem:[#allocation7 + $0x1c] sm:$0xf]
    %v720 = vld [vmem:[#allocation7 + $0x20] sm:$0xf]
    %v721 = vld [vmem:[#allocation7 + $0x24] sm:$0xf]
    %v722 = vld [vmem:[#allocation7 + $0x28] sm:$0xf]
    %v723 = vld [vmem:[#allocation7 + $0x2c] sm:$0xf]
    %v724 = vld [vmem:[#allocation7 + $0x30] sm:$0xf]
    %v725 = vld [vmem:[#allocation7 + $0x34] sm:$0xf]
    %v726 = vld [vmem:[#allocation7 + $0x38] sm:$0xf]
    %v727 = vld [vmem:[#allocation7 + $0x3c] sm:$0xf]
    %v728 = vld [vmem:[%s4] sm:$0x1]
    %v730 = vlaneseq
    %v731 = vshrl.u32 %v730, 7
    %v732 = vsub.s32 0, %v731
    %v733 = vrot.slane %v728, %v732
    %v751 = vunpack.c.l.b16 %v712
    %v752 = vunpack.c.l.b16 %v713
    %v753 = vunpack.c.l.b16 %v714
    %v754 = vunpack.c.l.b16 %v715
    %v755 = vunpack.c.l.b16 %v716
    %v756 = vunpack.c.l.b16 %v717
    %v757 = vunpack.c.l.b16 %v718
    %v758 = vunpack.c.l.b16 %v719
    %v759 = vunpack.c.l.b16 %v720
    %v760 = vunpack.c.l.b16 %v721
    %v761 = vunpack.c.l.b16 %v722
    %v762 = vunpack.c.l.b16 %v723
    %v763 = vunpack.c.l.b16 %v724
    %v764 = vunpack.c.l.b16 %v725
    %v765 = vunpack.c.l.b16 %v726
    %v766 = vunpack.c.l.b16 %v727
    %v767 = vpack.c.b16 %v752, %v751
    %v768 = vpack.c.b16 %v754, %v753
    %v769 = vpack.c.b16 %v756, %v755
    %v770 = vpack.c.b16 %v758, %v757
    %v771 = vpack.c.b16 %v760, %v759
    %v772 = vpack.c.b16 %v762, %v761
    %v773 = vpack.c.b16 %v764, %v763
    %v774 = vpack.c.b16 %v766, %v765
    %783 = vmatprep.subr.bf16.mxu0 0
    %784 = vmatpush1.bf16.msra.mxu0 %v767
    %785 = vmatprep.subr.bf16.mxu0 0
    %786 = vmatpush1.bf16.msra.mxu0 %v768
    %787 = vmatprep.subr.bf16.mxu0 0
    %788 = vmatpush1.bf16.msra.mxu0 %v769
    %789 = vmatprep.subr.bf16.mxu0 0
    %790 = vmatpush1.bf16.msra.mxu0 %v770
    %791 = vmatprep.subr.bf16.mxu0 0
    %792 = vmatpush1.bf16.msra.mxu0 %v771
    %793 = vmatprep.subr.bf16.mxu0 0
    %794 = vmatpush1.bf16.msra.mxu0 %v772
    %795 = vmatprep.subr.bf16.mxu0 0
    %796 = vmatpush1.bf16.msra.mxu0 %v773
    %797 = vmatprep.subr.bf16.mxu0 0
    %798 = vmatpush1.bf16.msra.mxu0 %v774
    %799 = vmatprep.subr.bf16.mxu0 0
    %800 = vmatpush1.bf16.msra.mxu0 0
    %801 = vmatprep.subr.bf16.mxu0 0
    %802 = vmatpush1.bf16.msra.mxu0 0
    %803 = vmatprep.subr.bf16.mxu0 0
    %804 = vmatpush1.bf16.msra.mxu0 0
    %805 = vmatprep.subr.bf16.mxu0 0
    %806 = vmatpush1.bf16.msra.mxu0 0
    %807 = vmatprep.subr.bf16.mxu0 0
    %808 = vmatpush1.bf16.msra.mxu0 0
    %809 = vmatprep.subr.bf16.mxu0 0
    %810 = vmatpush1.bf16.msra.mxu0 0
    %811 = vmatprep.subr.bf16.mxu0 0
    %812 = vmatpush1.bf16.msra.mxu0 0
    %813 = vmatprep.subr.bf16.mxu0 0
    %814 = vmatpush1.bf16.msra.mxu0 0
    %815 = vmatprep.mubr.bf16.mxu0 0
    %816 = vmatmul.mubr.bf16.gmra.mrb[0].mxu0 %v711
    %v817 = vpop.f32.mrb[0].mxu0
    %v818 = vadd.f32 %v733, %v817
    %v819 = vpop.f32.mrb[0].mxu0
    %v820 = vpop.f32.mrb[0].mxu0
    %v821 = vpop.f32.mrb[0].mxu0
    %822 = vdwg.mxu0
    %v823 = vmax.f32 %v818, 0.0
    %v824 = vpack.c.bf16 %v823, %v823
    %v825 = vld [vmem:[#allocation8] sm:$0xf]
    %v826 = vld [vmem:[#allocation8 + $0x4] sm:$0xf]
    %v827 = vld [vmem:[#allocation8 + $0x8] sm:$0xf]
    %v828 = vld [vmem:[#allocation8 + $0xc] sm:$0xf]
    %v829 = vld [vmem:[#allocation8 + $0x10] sm:$0xf]
    %v830 = vld [vmem:[#allocation8 + $0x14] sm:$0xf]
    %v831 = vld [vmem:[#allocation8 + $0x18] sm:$0xf]
    %v832 = vld [vmem:[#allocation8 + $0x1c] sm:$0xf]
    %v833 = vld [vmem:[#allocation8 + $0x20] sm:$0xf]
    %v834 = vld [vmem:[#allocation8 + $0x24] sm:$0xf]
    %v835 = vld [vmem:[#allocation8 + $0x28] sm:$0xf]
    %v836 = vld [vmem:[#allocation8 + $0x2c] sm:$0xf]
    %v837 = vld [vmem:[#allocation8 + $0x30] sm:$0xf]
    %v838 = vld [vmem:[#allocation8 + $0x34] sm:$0xf]
    %v839 = vld [vmem:[#allocation8 + $0x38] sm:$0xf]
    %v840 = vld [vmem:[#allocation8 + $0x3c] sm:$0xf]
    %v841 = vld [vmem:[%s6] sm:$0x1]
    %v843 = vlaneseq
    %v844 = vshrl.u32 %v843, 7
    %v845 = vsub.s32 0, %v844
    %v846 = vrot.slane %v841, %v845
    %v864 = vunpack.c.l.b16 %v825
    %v865 = vunpack.c.l.b16 %v826
    %v866 = vunpack.c.l.b16 %v827
    %v867 = vunpack.c.l.b16 %v828
    %v868 = vunpack.c.l.b16 %v829
    %v869 = vunpack.c.l.b16 %v830
    %v870 = vunpack.c.l.b16 %v831
    %v871 = vunpack.c.l.b16 %v832
    %v872 = vunpack.c.l.b16 %v833
    %v873 = vunpack.c.l.b16 %v834
    %v874 = vunpack.c.l.b16 %v835
    %v875 = vunpack.c.l.b16 %v836
    %v876 = vunpack.c.l.b16 %v837
    %v877 = vunpack.c.l.b16 %v838
    %v878 = vunpack.c.l.b16 %v839
    %v879 = vunpack.c.l.b16 %v840
    %v880 = vpack.c.b16 %v865, %v864
    %v881 = vpack.c.b16 %v867, %v866
    %v882 = vpack.c.b16 %v869, %v868
    %v883 = vpack.c.b16 %v871, %v870
    %v884 = vpack.c.b16 %v873, %v872
    %v885 = vpack.c.b16 %v875, %v874
    %v886 = vpack.c.b16 %v877, %v876
    %v887 = vpack.c.b16 %v879, %v878
    %896 = vmatprep.subr.bf16.mxu0 0
    %897 = vmatpush1.bf16.msra.mxu0 %v880
    %898 = vmatprep.subr.bf16.mxu0 0
    %899 = vmatpush1.bf16.msra.mxu0 %v881
    %900 = vmatprep.subr.bf16.mxu0 0
    %901 = vmatpush1.bf16.msra.mxu0 %v882
    %902 = vmatprep.subr.bf16.mxu0 0
    %903 = vmatpush1.bf16.msra.mxu0 %v883
    %904 = vmatprep.subr.bf16.mxu0 0
    %905 = vmatpush1.bf16.msra.mxu0 %v884
    %906 = vmatprep.subr.bf16.mxu0 0
    %907 = vmatpush1.bf16.msra.mxu0 %v885
    %908 = vmatprep.subr.bf16.mxu0 0
    %909 = vmatpush1.bf16.msra.mxu0 %v886
    %910 = vmatprep.subr.bf16.mxu0 0
    %911 = vmatpush1.bf16.msra.mxu0 %v887
    %912 = vmatprep.subr.bf16.mxu0 0
    %913 = vmatpush1.bf16.msra.mxu0 0
    %914 = vmatprep.subr.bf16.mxu0 0
    %915 = vmatpush1.bf16.msra.mxu0 0
    %916 = vmatprep.subr.bf16.mxu0 0
    %917 = vmatpush1.bf16.msra.mxu0 0
    %918 = vmatprep.subr.bf16.mxu0 0
    %919 = vmatpush1.bf16.msra.mxu0 0
    %920 = vmatprep.subr.bf16.mxu0 0
    %921 = vmatpush1.bf16.msra.mxu0 0
    %922 = vmatprep.subr.bf16.mxu0 0
    %923 = vmatpush1.bf16.msra.mxu0 0
    %924 = vmatprep.subr.bf16.mxu0 0
    %925 = vmatpush1.bf16.msra.mxu0 0
    %926 = vmatprep.subr.bf16.mxu0 0
    %927 = vmatpush1.bf16.msra.mxu0 0
    %928 = vmatprep.mubr.bf16.mxu0 0
    %929 = vmatmul.mubr.bf16.gmra.mrb[0].mxu0 %v824
    %v930 = vpop.f32.mrb[0].mxu0
    %v931 = vadd.f32 %v846, %v930
    %v932 = vpop.f32.mrb[0].mxu0
    %v933 = vpop.f32.mrb[0].mxu0
    %v934 = vpop.f32.mrb[0].mxu0
    %935 = vdwg.mxu0
    %936 = vmax.xlane.f32.xlu0 %v931
    %v937 = vpop.xlane.xlu0 %936
    %v938 = vsub.f32 %v931, %v937
    %v939 = vmul.f32 %v938, 1.442695
    %v940 = vpow.pop %v939
    %941 = vadd.xlane.f32.xlu0 %v940
    %v942 = vpop.xlane.xlu0 %941
    %v943 = vlog2.pop %v942
    %v944 = vmul.f32 %v943, 0.6931472
    %v945 = vsub.f32 %v938, %v944
    %946 = vst [vmem:[#allocation10] sm:$0xff] %v945
    // Predicated region
    $region46: #{tpu_custom_call.1} parent=1 // pred_check
      _
    $region47: #{tpu_custom_call.1} parent=1 // pred_check_branch
      %948 = sbr.rel (0) target = $region49
    $region48: #{tpu_custom_call.1} parent=1 // pred_region
      %s950 = ssub.s32 128, 128
      %951 = vsyncadd [#allocation4], %s950
      %s953 = sshll.u32 [#allocation10], 4
      %s954 = int_to_ptr.vmem [resolvable:$true] %s953
      %956 = dma.vmem_to_hbm [thread:$0]  %s954, 128, %s7, [#allocation4]
    $region49: #{tpu_custom_call.1} parent=1 // pred_fallthru
      _
    // Predicated region
    $region50: #{tpu_custom_call.1} parent=1 // pred_check
      _
    $region51: #{tpu_custom_call.1} parent=1 // pred_check_branch
      %958 = sbr.rel (0) target = $region53
    $region52: #{tpu_custom_call.1} parent=1 // pred_region
      %959 = dma.done [#allocation4], 128
    $region53: #{tpu_custom_call.1} parent=1 // pred_fallthru
      _
    %960 = vsyncpa [#allocation3], 1
    %961 = vsyncpa [#allocation6], 1
    %962 = vsyncpa [#allocation9], 1
    %963 = vsyncpa [#allocation4], 1

</llo_original>
